<compile_context>
chip_gen: v7x
topology: tpu7x:2x2x1
jax: 0.10.0
libtpu: 0.0.40
codegen_flags: <defaults>
</compile_context>

<pallas_src>
import jax
import jax.numpy as jnp
from jax import lax
from jax.experimental import pallas as pl
from jax.experimental.pallas import tpu as pltpu


def _self_attention_kernel(x_ref, w_ref, b_ref, gamma_ref, o_ref):
    # x_ref block: (1, C, N) channel-major tokens, f32.
    C = x_ref.shape[1]
    Cf = w_ref.shape[0]
    Cqp = (Cf - C) // 2              # padded query/key channels (multiple of 8)

    g = gamma_ref[0]                 # scalar gamma from SMEM
    x = x_ref[0]                     # (C, N) f32
    xb = x.astype(jnp.bfloat16)

    # Fused 1x1-conv projections: ONE MXU weight push for q/k/v.
    # bf16 operands, f32 accumulation; single f32 bias add.
    qkv = jnp.dot(w_ref[...], xb,
                  preferred_element_type=jnp.float32) + b_ref[...]   # (Cf, N)

    # Slices land on 8-sublane boundaries (q/k blocks were zero-padded to Cqp).
    q = qkv[0:Cqp].astype(jnp.bfloat16)            # (Cqp, N)
    k = qkv[Cqp:2 * Cqp].astype(jnp.bfloat16)      # (Cqp, N)
    v = qkv[2 * Cqp:].astype(jnp.bfloat16)         # (C,   N)

    # energy_t[m, n] = sum_c k[c, m] * q[c, n]   (== energy[n, m] of the ref).
    # Zero-padded q/k rows contribute 0, so this equals the Cq contraction
    # exactly.  bf16 operands, f32 accumulation on the MXU.
    energy_t = lax.dot_general(k, q, (((0,), (0,)), ((), ())),
                               preferred_element_type=jnp.float32)   # (N, N)

    # Reference softmax(energy, dim=-1) == softmax over the SUBLANE axis here.
    # Elementwise math stays f32 (v5e has no bf16 VPU/EUP).  Normalization is
    # deferred until after the value matmul.
    energy_t = energy_t - jnp.max(energy_t, axis=0, keepdims=True)
    p = jnp.exp(energy_t)                                            # (N, N)
    l = jnp.sum(p, axis=0, keepdims=True)                            # (1, N)

    # out_u[c, n] = sum_m v[c, m] * p[m, n]: plain (C,M)@(M,N) contraction,
    # no transpose of the (N,N) attention tile.
    out_u = jnp.dot(v, p.astype(jnp.bfloat16),
                    preferred_element_type=jnp.float32)              # (C, N)

    # Deferred softmax normalization folded with gamma, then residual add.
    scale = g * pl.reciprocal(l, approx=True)                        # (1, N)
    o_ref[0] = (out_u * scale + x).astype(o_ref.dtype)


def self_attention_pallas(x_nchw, Wq, bq, Wk, bk, Wv, bv, gamma):
    """x_nchw: (B, C, H, W) float32. Weights as in nn.Conv2d(.., 1): (Cout, Cin)."""
    B, C, H, W = x_nchw.shape
    N = H * W
    Cq = Wq.shape[0]
    Cqp = max(8, ((Cq + 7) // 8) * 8)   # pad q/k row blocks to a sublane multiple

    # Channel-major tokens: pure reshape, no HBM transpose pass; N lane-dense.
    x_tok = x_nchw.reshape(B, C, N)

    def _pad_rows(a, rows):
        pad = rows - a.shape[0]
        if pad == 0:
            return a
        return jnp.concatenate(
            [a, jnp.zeros((pad,) + a.shape[1:], a.dtype)], axis=0)

    # Fused projection weight/bias: [q (padded) ; k (padded) ; v].  The zero
    # rows contribute nothing to the energy contraction, so results match the
    # unfused projections exactly.
    w_fused = jnp.concatenate(
        [_pad_rows(Wq, Cqp), _pad_rows(Wk, Cqp), Wv], axis=0
    ).astype(jnp.bfloat16)                                     # (2*Cqp + C, C)
    b_fused = jnp.concatenate(
        [_pad_rows(bq.reshape(Cq, 1), Cqp),
         _pad_rows(bk.reshape(Cq, 1), Cqp),
         bv.reshape(C, 1)], axis=0).astype(jnp.float32)        # (2*Cqp + C, 1)
    Cf = 2 * Cqp + C
    g1 = jnp.asarray(gamma, jnp.float32).reshape(1)

    out_tok = pl.pallas_call(
        _self_attention_kernel,
        out_shape=jax.ShapeDtypeStruct((B, C, N), x_tok.dtype),
        grid_spec=pltpu.PrefetchScalarGridSpec(
            num_scalar_prefetch=0,
            # One batch element per grid step: bounded (N,N) live ranges and
            # >= 2 pipelined steps per TensorCore on v7x.
            grid=(B,),
            in_specs=[
                pl.BlockSpec((1, C, N), lambda b: (b, 0, 0)),       # x tokens
                pl.BlockSpec((Cf, C), lambda b: (0, 0)),            # fused W
                pl.BlockSpec((Cf, 1), lambda b: (0, 0)),            # fused b
                pl.BlockSpec(memory_space=pltpu.MemorySpace.SMEM),  # gamma
            ],
            out_specs=pl.BlockSpec((1, C, N), lambda b: (b, 0, 0)),
        ),
        compiler_params=pltpu.CompilerParams(
            dimension_semantics=("parallel",),
            vmem_limit_bytes=32 * 1024 * 1024),
    )(x_tok, w_fused, b_fused, g1)

    # (B, C, N) -> NCHW: pure reshape, free.
    return out_tok.reshape(B, C, H, W)


def self_attention_ref(x, Wq, bq, Wk, bk, Wv, bv, gamma):
    """Pure-JAX reference mirroring the PyTorch forward exactly (f32)."""
    B, C, H, W = x.shape
    N = H * W
    xf = x.reshape(B, C, N)
    q = jnp.einsum('oc,bcn->bon', Wq, xf) + bq[None, :, None]   # (B, Cq, N)
    k = jnp.einsum('oc,bcn->bon', Wk, xf) + bk[None, :, None]   # (B, Cq, N)
    v = jnp.einsum('oc,bcn->bon', Wv, xf) + bv[None, :, None]   # (B, C,  N)
    energy = jnp.einsum('bqn,bqm->bnm', q, k)                    # (B, N, N)
    attn = jax.nn.softmax(energy, axis=-1)
    out = jnp.einsum('bcm,bnm->bcn', v, attn)                    # (B, C, N)
    out = out.reshape(B, C, H, W)
    return gamma * out + x


if __name__ == "__main__":
    key = jax.random.PRNGKey(0)
    B, C, H, W = 4, 32, 16, 16        # C divisible by 8 (query/key dim = C // 8)
    Cq = C // 8

    k0, k1, k2, k3, k4, k5, k6 = jax.random.split(key, 7)
    x = jax.random.normal(k0, (B, C, H, W), jnp.float32)

    # Deterministic parameter init (shapes match nn.Conv2d(C, ., 1) weights).
    scale = 1.0 / jnp.sqrt(jnp.float32(C))
    Wq = jax.random.uniform(k1, (Cq, C), jnp.float32, -scale, scale)
    bq = jax.random.uniform(k2, (Cq,), jnp.float32, -scale, scale)
    Wk = jax.random.uniform(k3, (Cq, C), jnp.float32, -scale, scale)
    bk = jax.random.uniform(k4, (Cq,), jnp.float32, -scale, scale)
    Wv = jax.random.uniform(k5, (C, C), jnp.float32, -scale, scale)
    bv = jax.random.uniform(k6, (C,), jnp.float32, -scale, scale)
    # Module init is gamma = 0 (output == x); use a nonzero value here so the
    # attention path is actually exercised/validated.
    gamma = jnp.float32(0.7)

    out = jax.block_until_ready(
        self_attention_pallas(x, Wq, bq, Wk, bk, Wv, bv, gamma))
    ref = jax.block_until_ready(
        self_attention_ref(x, Wq, bq, Wk, bk, Wv, bv, gamma))

    assert out.shape == x.shape and out.dtype == x.dtype
    err = jnp.max(jnp.abs(out - ref))
    # bf16 matmuls (projections, energy, value) + approx reciprocal -> slightly
    # looser tolerance than pure f32.
    assert jnp.allclose(out, ref, atol=2e-2, rtol=2e-2), f"max err {err}"
    print("KERNEL_OK")
</pallas_src>

<mosaic_0001>
module attributes {stable_mosaic.version = 11 : i64} {
  func.func @_self_attention_kernel(%arg0: i32, %arg1: memref<1x32x256xf32, #tpu.memory_space<vmem>>, %arg2: memref<48x32xbf16, #tpu.memory_space<vmem>>, %arg3: memref<48x1xf32, #tpu.memory_space<vmem>>, %arg4: memref<1xf32, #tpu.memory_space<smem>>, %arg5: memref<1x32x256xf32, #tpu.memory_space<vmem>>) attributes {dimension_semantics = [#tpu.dimension_semantics<parallel>], iteration_bounds = array<i64: 4>, scalar_prefetch = 0 : i64, scratch_operands = 0 : i64, tpu.core_type = #tpu.core_type<tc>, window_params = [{transform_indices = @transform_0, window_bounds = array<i64: 1, 32, 256>}, {pipeline_mode = #tpu.pipeline_mode<synchronous>, transform_indices = @transform_1, window_bounds = array<i64: 48, 32>}, {pipeline_mode = #tpu.pipeline_mode<synchronous>, transform_indices = @transform_2, window_bounds = array<i64: 48, 1>}, {transform_indices = @transform_3, window_bounds = array<i64: 1>}, {transform_indices = @transform_4, window_bounds = array<i64: 1, 32, 256>}]} {
    %c0 = arith.constant 0 : index
    %0 = memref.load %arg4[%c0] : memref<1xf32, #tpu.memory_space<smem>>
    %c0_0 = arith.constant 0 : index
    %c0_1 = arith.constant 0 : index
    %c0_2 = arith.constant 0 : index
    %1 = vector.load %arg1[%c0_0, %c0_1, %c0_2] : memref<1x32x256xf32, #tpu.memory_space<vmem>>, vector<1x32x256xf32>
    %2 = vector.shape_cast %1 : vector<1x32x256xf32> to vector<32x256xf32>
    %3 = arith.truncf %2 : vector<32x256xf32> to vector<32x256xbf16>
    %c0_3 = arith.constant 0 : index
    %c0_4 = arith.constant 0 : index
    %4 = vector.load %arg2[%c0_3, %c0_4] : memref<48x32xbf16, #tpu.memory_space<vmem>>, vector<48x32xbf16>
    %cst = arith.constant dense<0.000000e+00> : vector<48x256xf32>
    %5 = tpu.matmul %4, %3, %cst {dimension_numbers = #tpu.dot_dimension_numbers<[1], [0], [0], [1], [0, 0, 1, 1], [], []>} : vector<48x32xbf16>, vector<32x256xbf16>, vector<48x256xf32> -> vector<48x256xf32>
    %c0_5 = arith.constant 0 : index
    %c0_6 = arith.constant 0 : index
    %6 = vector.load %arg3[%c0_5, %c0_6] : memref<48x1xf32, #tpu.memory_space<vmem>>, vector<48x1xf32>
    %7 = vector.broadcast %6 : vector<48x1xf32> to vector<48x256xf32>
    %8 = arith.addf %5, %7 : vector<48x256xf32>
    %9 = vector.extract_strided_slice %8 {offsets = [0, 0], sizes = [8, 256], strides = [1, 1]} : vector<48x256xf32> to vector<8x256xf32>
    %10 = arith.truncf %9 : vector<8x256xf32> to vector<8x256xbf16>
    %11 = vector.extract_strided_slice %8 {offsets = [8, 0], sizes = [8, 256], strides = [1, 1]} : vector<48x256xf32> to vector<8x256xf32>
    %12 = arith.truncf %11 : vector<8x256xf32> to vector<8x256xbf16>
    %13 = vector.extract_strided_slice %8 {offsets = [16, 0], sizes = [32, 256], strides = [1, 1]} : vector<48x256xf32> to vector<32x256xf32>
    %14 = arith.truncf %13 : vector<32x256xf32> to vector<32x256xbf16>
    %cst_7 = arith.constant dense<0.000000e+00> : vector<256x256xf32>
    %15 = tpu.matmul %12, %10, %cst_7 {dimension_numbers = #tpu.dot_dimension_numbers<[0], [0], [1], [1], [0, 1, 1, 1], [], []>} : vector<8x256xbf16>, vector<8x256xbf16>, vector<256x256xf32> -> vector<256x256xf32>
    %cst_8 = arith.constant dense<0xFF800000> : vector<256xf32>
    %16 = vector.multi_reduction <maximumf>, %15, %cst_8 [0] : vector<256x256xf32> to vector<256xf32>
    %17 = vector.shape_cast %16 : vector<256xf32> to vector<1x256xf32>
    %18 = vector.broadcast %17 : vector<1x256xf32> to vector<256x256xf32>
    %19 = arith.subf %15, %18 : vector<256x256xf32>
    %20 = math.exp %19 : vector<256x256xf32>
    %cst_9 = arith.constant dense<0.000000e+00> : vector<256xf32>
    %21 = vector.multi_reduction <add>, %20, %cst_9 [0] : vector<256x256xf32> to vector<256xf32>
    %22 = vector.shape_cast %21 : vector<256xf32> to vector<1x256xf32>
    %23 = arith.truncf %20 : vector<256x256xf32> to vector<256x256xbf16>
    %cst_10 = arith.constant dense<0.000000e+00> : vector<32x256xf32>
    %24 = tpu.matmul %14, %23, %cst_10 {dimension_numbers = #tpu.dot_dimension_numbers<[1], [0], [0], [1], [0, 0, 1, 1], [], []>} : vector<32x256xbf16>, vector<256x256xbf16>, vector<32x256xf32> -> vector<32x256xf32>
    %25 = tpu.reciprocal %22 {approx = true} : vector<1x256xf32> -> vector<1x256xf32>
    %26 = vector.broadcast %0 : f32 to vector<1x256xf32>
    %27 = arith.mulf %26, %25 : vector<1x256xf32>
    %28 = vector.broadcast %27 : vector<1x256xf32> to vector<32x256xf32>
    %29 = arith.mulf %24, %28 : vector<32x256xf32>
    %30 = arith.addf %29, %2 : vector<32x256xf32>
    %c0_11 = arith.constant 0 : index
    %c0_12 = arith.constant 0 : index
    %c0_13 = arith.constant 0 : index
    %31 = vector.load %arg5[%c0_11, %c0_12, %c0_13] : memref<1x32x256xf32, #tpu.memory_space<vmem>>, vector<1x32x256xf32>
    %32 = vector.shape_cast %31 : vector<1x32x256xf32> to vector<32x256xf32>
    %33 = vector.shape_cast %30 : vector<32x256xf32> to vector<1x32x256xf32>
    tpu.vector_store %arg5[%c0_11, %c0_12, %c0_13], %33 {strides = array<i32>} : memref<1x32x256xf32, #tpu.memory_space<vmem>>, vector<1x32x256xf32>,
    return
  }
  func.func @transform_0(%arg0: i32) -> (i32, i32, i32) {
    %c0_i32 = arith.constant 0 : i32
    %c0_i32_0 = arith.constant 0 : i32
    %c0_i32_1 = arith.constant 0 : i32
    return %arg0, %c0_i32, %c0_i32_0 : i32, i32, i32
  }
  func.func @transform_1(%arg0: i32) -> (i32, i32) {
    %c0_i32 = arith.constant 0 : i32
    %c0_i32_0 = arith.constant 0 : i32
    %c0_i32_1 = arith.constant 0 : i32
    return %c0_i32, %c0_i32_0 : i32, i32
  }
  func.func @transform_2(%arg0: i32) -> (i32, i32) {
    %c0_i32 = arith.constant 0 : i32
    %c0_i32_0 = arith.constant 0 : i32
    %c0_i32_1 = arith.constant 0 : i32
    return %c0_i32, %c0_i32_0 : i32, i32
  }
  func.func @transform_3(%arg0: i32) -> i32 {
    %c0_i32 = arith.constant 0 : i32
    %c0_i32_0 = arith.constant 0 : i32
    return %c0_i32 : i32
  }
  func.func @transform_4(%arg0: i32) -> (i32, i32, i32) {
    %c0_i32 = arith.constant 0 : i32
    %c0_i32_0 = arith.constant 0 : i32
    %c0_i32_1 = arith.constant 0 : i32
    return %arg0, %c0_i32, %c0_i32_0 : i32, i32, i32
  }
}

</mosaic_0001>

<llo_original>
// kernel: tpu_custom_call.1
$region0: #{tpu_custom_call.1}
  #allocation0 [shape = 'u32[]', space=smem, size = 0x4, offset = 0x4, fixed_abs, tag = 'smem constant byte address 0x4 - core index']
  #allocation1 [shape = 'u32[144,128]{1,0:T(1,128)}', space=vmem, size = 0x12000, scoped, tag = 'internal scratch']
  #allocation2 [shape = 'f32[1]{0:T(128)S(6)}', space=smem, size = 0x200, scoped, tag = 'scoped memory for tpu_custom_call.1']
  %s0 = inlined_call_operand.hbm [shape: f32[4,32,256], index: 0, kind: input, shape index: {}]
  %s1 = inlined_call_operand.vmem [shape: bf16[48,32], index: 1, kind: input, shape index: {}]
  %s2 = inlined_call_operand.vmem [shape: f32[48,1], index: 2, kind: input, shape index: {}]
  %s3 = inlined_call_operand.<no memory space> [shape: f32[1], index: 3, kind: input, shape index: {}]
  %s4 = inlined_call_operand.hbm [shape: f32[4,32,256], index: 4, kind: output, shape index: {}]
  %s5 = sld [smem:[#allocation0]]
  $region53: #{tpu_custom_call.1} parent=0
    _
  %s7 = ssub.s32 1, %s5
  %s8 = scalar_select 0, %s7, %s5
  %9 = sst [smem:[#allocation2]] %s3
  $region1: #{tpu_custom_call.1} parent=0
    #allocation3 [shape = 'u8[65536]{0}', space=vmem, size = 0x10000, scoped, tag = 'input window, operand 0']
    #allocation4 [shape = 's32[2]{0}', space=sflag, size = 0x8, scoped, tag = 'scoped memory for tpu_custom_call.1']
    #allocation5 [shape = 's32[2]{0}', space=sflag, size = 0x8, scoped, tag = 'scoped memory for tpu_custom_call.1']
    #allocation6 [shape = 'u8[65536]{0}', space=vmem, size = 0x10000, scoped, tag = 'output window, operand 0']
    %10 = vsyncpa [#allocation4], 0
    %s11 = scalar_lea.sflag [#allocation4], 1
    %12 = vsyncpa %s11, 0
    %13 = vsyncpa [#allocation5], 0
    %s14 = scalar_lea.sflag [#allocation5], 1
    %15 = vsyncpa %s14, 0
    loop: start=0, step=1, limit=6
    $region2: #{tpu_custom_call.1} parent=1 // loop_pre_header
      _
    $region3: #{tpu_custom_call.1} parent=1 // loop_header
      %s17 = sphi 0, %s21
      %p18 = scmp.ge.s32.totalorder %s17, 6
      %s27 = sphi 0, %s29
      %s30 = sphi 0, %s27
      %s31 = sphi 0, %s30
      %s47 = sphi 0, %s31
      %s51 = sphi 0, %s51
      %s53 = sphi 0, %s51
      %s54 = sphi 0, %s53
      %s68 = sphi 0, %s54
      %s72 = sphi 0, %s72
      %s74 = sphi 0, %s72
      %s75 = sphi 0, %s74
      %s89 = sphi 0, %s75
      %s93 = sphi 0, %s93
      %s95 = sphi 0, %s93
      %s96 = sphi 0, %s95
      %s110 = sphi 0, %s96
      %s116 = sphi 0, %s118
      %s119 = sphi 0, %s116
      %s120 = sphi 0, %s119
      %s136 = sphi 0, %s120
    $region4: #{tpu_custom_call.1} parent=1 // loop_header_branch
      %20 = sbr.rel (%p18) target = $region8
    $region5: #{tpu_custom_call.1} parent=1 // loop_body
      %s22 = ssub.s32 %s17, 1
      %s23 = ssub.s32 %s17, 2
      %s24 = sadd.s32 %s17, 1
      %s25 = ssub.s32 %s17, %s24
      %p26 = scmp.eq.s32.totalorder %s25, 0
      %s28 = sadd.s32 %s27, 1
      %s29 = scalar_select %p26, %s27, %s28
      %p32 = pneg %p26
      %p33 = scmp.eq.s32.totalorder %s17, 3
      %p34 = por %p32, %p33
      %p35 = scmp.ne.s32.totalorder %s27, %s30
      %p36 = scmp.eq.s32.totalorder %s17, 0
      %p37 = por %p35, %p36
      %p38 = scmp.ne.s32.totalorder %s27, %s30
      %p39 = scmp.eq.s32.totalorder %s22, 3
      %p40 = por %p38, %p39
      %p41 = scmp.ne.s32.totalorder %s30, %s31
      %p42 = scmp.eq.s32.totalorder %s22, 0
      %p43 = por %p41, %p42
      %p44 = scmp.ne.s32.totalorder %s30, %s31
      %p45 = scmp.eq.s32.totalorder %s23, 3
      %p46 = por %p44, %p45
      %p48 = scmp.ne.s32.totalorder %s31, %s47
      %p49 = scmp.eq.s32.totalorder %s23, 0
      %p50 = por %p48, %p49
      %s52 = sadd.s32 %s51, 1
      %p55 = scmp.eq.s32.totalorder %s17, 3
      %p56 = scmp.ne.s32.totalorder %s51, %s53
      %p57 = scmp.eq.s32.totalorder %s17, 0
      %p58 = por %p56, %p57
      %p59 = scmp.ne.s32.totalorder %s51, %s53
      %p60 = scmp.eq.s32.totalorder %s22, 3
      %p61 = por %p59, %p60
      %p62 = scmp.ne.s32.totalorder %s53, %s54
      %p63 = scmp.eq.s32.totalorder %s22, 0
      %p64 = por %p62, %p63
      %p65 = scmp.ne.s32.totalorder %s53, %s54
      %p66 = scmp.eq.s32.totalorder %s23, 3
      %p67 = por %p65, %p66
      %p69 = scmp.ne.s32.totalorder %s54, %s68
      %p70 = scmp.eq.s32.totalorder %s23, 0
      %p71 = por %p69, %p70
      %s73 = sadd.s32 %s72, 1
      %p76 = scmp.eq.s32.totalorder %s17, 3
      %p77 = scmp.ne.s32.totalorder %s72, %s74
      %p78 = scmp.eq.s32.totalorder %s17, 0
      %p79 = por %p77, %p78
      %p80 = scmp.ne.s32.totalorder %s72, %s74
      %p81 = scmp.eq.s32.totalorder %s22, 3
      %p82 = por %p80, %p81
      %p83 = scmp.ne.s32.totalorder %s74, %s75
      %p84 = scmp.eq.s32.totalorder %s22, 0
      %p85 = por %p83, %p84
      %p86 = scmp.ne.s32.totalorder %s74, %s75
      %p87 = scmp.eq.s32.totalorder %s23, 3
      %p88 = por %p86, %p87
      %p90 = scmp.ne.s32.totalorder %s75, %s89
      %p91 = scmp.eq.s32.totalorder %s23, 0
      %p92 = por %p90, %p91
      %s94 = sadd.s32 %s93, 1
      %p97 = scmp.eq.s32.totalorder %s17, 3
      %p98 = scmp.ne.s32.totalorder %s93, %s95
      %p99 = scmp.eq.s32.totalorder %s17, 0
      %p100 = por %p98, %p99
      %p101 = scmp.ne.s32.totalorder %s93, %s95
      %p102 = scmp.eq.s32.totalorder %s22, 3
      %p103 = por %p101, %p102
      %p104 = scmp.ne.s32.totalorder %s95, %s96
      %p105 = scmp.eq.s32.totalorder %s22, 0
      %p106 = por %p104, %p105
      %p107 = scmp.ne.s32.totalorder %s95, %s96
      %p108 = scmp.eq.s32.totalorder %s23, 3
      %p109 = por %p107, %p108
      %p111 = scmp.ne.s32.totalorder %s96, %s110
      %p112 = scmp.eq.s32.totalorder %s23, 0
      %p113 = por %p111, %p112
      %s114 = ssub.s32 %s17, %s24
      %p115 = scmp.eq.s32.totalorder %s114, 0
      %s117 = sadd.s32 %s116, 1
      %s118 = scalar_select %p115, %s116, %s117
      %p121 = pneg %p115
      %p122 = scmp.eq.s32.totalorder %s17, 3
      %p123 = por %p121, %p122
      %p124 = scmp.ne.s32.totalorder %s116, %s119
      %p125 = scmp.eq.s32.totalorder %s17, 0
      %p126 = por %p124, %p125
      %p127 = scmp.ne.s32.totalorder %s116, %s119
      %p128 = scmp.eq.s32.totalorder %s22, 3
      %p129 = por %p127, %p128
      %p130 = scmp.ne.s32.totalorder %s119, %s120
      %p131 = scmp.eq.s32.totalorder %s22, 0
      %p132 = por %p130, %p131
      %p133 = scmp.ne.s32.totalorder %s119, %s120
      %p134 = scmp.eq.s32.totalorder %s23, 3
      %p135 = por %p133, %p134
      %p137 = scmp.ne.s32.totalorder %s120, %s136
      %p138 = scmp.eq.s32.totalorder %s23, 0
      %p139 = por %p137, %p138
      %p140 = scmp.le.s32.totalorder 1, %s17
      %p141 = scmp.lt.s32.totalorder %s17, 5
      %p142 = pnand %p140, %p141
      %p143 = pneg %p142
      // Predicated region
      $region9: #{tpu_custom_call.1} parent=5 // pred_check
        _
      $region10: #{tpu_custom_call.1} parent=5 // pred_check_branch
        %145 = sbr.rel (%p142) target = $region12
      $region11: #{tpu_custom_call.1} parent=5 // pred_region
        %s146 = ssub.s32 %s17, 1
        // Predicated region
        $region13: #{tpu_custom_call.1} parent=11 // pred_check
          %p147 = pneg %p64
        $region14: #{tpu_custom_call.1} parent=11 // pred_check_branch
          %149 = sbr.rel (%p147) target = $region16
        $region15: #{tpu_custom_call.1} parent=11 // pred_region
          _
        $region16: #{tpu_custom_call.1} parent=11 // pred_fallthru
          _
        // Predicated region
        $region17: #{tpu_custom_call.1} parent=11 // pred_check
          %p150 = pneg %p85
        $region18: #{tpu_custom_call.1} parent=11 // pred_check_branch
          %152 = sbr.rel (%p150) target = $region20
        $region19: #{tpu_custom_call.1} parent=11 // pred_region
          _
        $region20: #{tpu_custom_call.1} parent=11 // pred_fallthru
          _
        // Predicated region
        $region21: #{tpu_custom_call.1} parent=11 // pred_check
          %p153 = pneg %p106
        $region22: #{tpu_custom_call.1} parent=11 // pred_check_branch
          %155 = sbr.rel (%p153) target = $region24
        $region23: #{tpu_custom_call.1} parent=11 // pred_region
          _
        $region24: #{tpu_custom_call.1} parent=11 // pred_fallthru
          _
      $region12: #{tpu_custom_call.1} parent=5 // pred_fallthru
        _
      %p156 = scmp.lt.s32.totalorder %s17, 4
      // Predicated region
      $region25: #{tpu_custom_call.1} parent=5 // pred_check
        %p157 = pneg %p156
      $region26: #{tpu_custom_call.1} parent=5 // pred_check_branch
        %159 = sbr.rel (%p157) target = $region28
      $region27: #{tpu_custom_call.1} parent=5 // pred_region
        // Predicated region
        $region29: #{tpu_custom_call.1} parent=27 // pred_check
          %p160 = pneg %p37
        $region30: #{tpu_custom_call.1} parent=27 // pred_check_branch
          %162 = sbr.rel (%p160) target = $region32
        $region31: #{tpu_custom_call.1} parent=27 // pred_region
          %s163 = sand.u32 %s27, 1
          %s164 = scalar_lea.sflag [#allocation4], %s163
          %s165 = sand.u32 %s27, 1
          %s166 = smul.addr %s165, 64
          %s167 = scalar_lea.vmem [#allocation3], %s166
          %s169 = ssub.s32 1024, 1024
          %170 = vsyncadd %s164, %s169
          %s171 = smul.addr %s17, 8
          %s172 = smul.addr %s171, 128
          %s173 = scalar_lea.hbm %s0, %s172
          %s174 = sshll.u32 %s167, 4
          %s175 = int_to_ptr.vmem [resolvable:$true] %s174
          %180 = dma.hbm_to_vmem [thread:$0]  %s173, 1024, %s175, %s164, 256, 256, 16
        $region32: #{tpu_custom_call.1} parent=27 // pred_fallthru
          _
      $region28: #{tpu_custom_call.1} parent=5 // pred_fallthru
        _
      %p181 = scmp.le.s32.totalorder 1, %s17
      %p182 = scmp.lt.s32.totalorder %s17, 5
      %p183 = pnand %p181, %p182
      %p184 = pneg %p183
      // Predicated region
      $region33: #{tpu_custom_call.1} parent=5 // pred_check
        _
      $region34: #{tpu_custom_call.1} parent=5 // pred_check_branch
        %186 = sbr.rel (%p183) target = $region36
      $region35: #{tpu_custom_call.1} parent=5 // pred_region
        %s187 = ssub.s32 %s17, 1
        %s188 = sand.u32 %s30, 1
        %s189 = scalar_lea.sflag [#allocation4], %s188
        %s190 = sand.u32 %s30, 1
        %s191 = smul.addr %s190, 64
        %s192 = scalar_lea.vmem [#allocation3], %s191
        // Predicated region
        $region37: #{tpu_custom_call.1} parent=35 // pred_check
          %p193 = pneg %p43
        $region38: #{tpu_custom_call.1} parent=35 // pred_check_branch
          %195 = sbr.rel (%p193) target = $region40
        $region39: #{tpu_custom_call.1} parent=35 // pred_region
          %196 = dma.done %s189, 1024
        $region40: #{tpu_custom_call.1} parent=35 // pred_fallthru
          _
        %s197 = sand.u32 %s30, 1
        %s198 = scalar_lea.sflag [#allocation4], %s197
        %s199 = sand.u32 %s30, 1
        %s200 = smul.addr %s199, 64
        %s201 = scalar_lea.vmem [#allocation3], %s200
        %p202 = pneg %p43
        %p203 = pneg %p40
        %p204 = pneg %p64
        %p205 = pneg %p61
        %p206 = pneg %p85
        %p207 = pneg %p82
        %p208 = pneg %p106
        %p209 = pneg %p103
        %p210 = pneg %p132
        %p211 = pneg %p129
        %s212 = sand.u32 %s119, 1
        %s213 = scalar_lea.sflag [#allocation5], %s212
        %s214 = sand.u32 %s119, 1
        %s215 = smul.addr %s214, 64
        %s216 = scalar_lea.vmem [#allocation6], %s215
        %s218 = sld [smem:[#allocation2]]
        %v219 = vld [vmem:[%s192] sm:$0xff]
        %v220 = vld [vmem:[%s192 + $0x8] sm:$0xff]
        %v221 = vld [vmem:[%s192 + $0x10] sm:$0xff]
        %v222 = vld [vmem:[%s192 + $0x18] sm:$0xff]
        %v223 = vld [vmem:[%s192 + $0x20] sm:$0xff]
        %v224 = vld [vmem:[%s192 + $0x28] sm:$0xff]
        %v225 = vld [vmem:[%s192 + $0x30] sm:$0xff]
        %v226 = vld [vmem:[%s192 + $0x38] sm:$0xff]
        %v227 = vpack.c.bf16 %v221, %v219
        %v228 = vpack.c.bf16 %v222, %v220
        %v229 = vpack.c.bf16 %v225, %v223
        %v230 = vpack.c.bf16 %v226, %v224
        %v231 = vld [vmem:[%s1] sm:$0xf]
        %v232 = vld [vmem:[%s1 + $0x4] sm:$0xf]
        %v233 = vld [vmem:[%s1 + $0x8] sm:$0xf]
        %v234 = vld [vmem:[%s1 + $0xc] sm:$0xf]
        %v235 = vld [vmem:[%s1 + $0x10] sm:$0xf]
        %v236 = vld [vmem:[%s1 + $0x14] sm:$0xf]
        %v237 = vld [vmem:[%s2] sm:$0xff]
        %v238 = vld [vmem:[%s2 + $0x8] sm:$0xff]
        %v239 = vld [vmem:[%s2 + $0x10] sm:$0xff]
        %v240 = vld [vmem:[%s2 + $0x18] sm:$0xff]
        %v241 = vld [vmem:[%s2 + $0x20] sm:$0xff]
        %v242 = vld [vmem:[%s2 + $0x28] sm:$0xff]
        %244 = vset.pattern.permute.xlu0 0
        %245 = vperm.xlu0 %244, %v237
        %v246 = vpop.permute.xlu0 %245
        %249 = vset.pattern.permute.xlu0 0
        %250 = vperm.xlu0 %249, %v238
        %v251 = vpop.permute.xlu0 %250
        %254 = vset.pattern.permute.xlu0 0
        %255 = vperm.xlu0 %254, %v239
        %v256 = vpop.permute.xlu0 %255
        %259 = vset.pattern.permute.xlu0 0
        %260 = vperm.xlu0 %259, %v240
        %v261 = vpop.permute.xlu0 %260
        %264 = vset.pattern.permute.xlu0 0
        %265 = vperm.xlu0 %264, %v241
        %v266 = vpop.permute.xlu0 %265
        %269 = vset.pattern.permute.xlu0 0
        %270 = vperm.xlu0 %269, %v242
        %v271 = vpop.permute.xlu0 %270
        %v279 = vunpack.c.l.b16 %v231
        %v280 = vunpack.c.l.b16 %v232
        %v281 = vunpack.c.l.b16 %v233
        %v282 = vunpack.c.l.b16 %v234
        %v283 = vunpack.c.l.b16 %v235
        %v284 = vunpack.c.l.b16 %v236
        %v285 = vpack.c.b16 %v280, %v279
        %v286 = vpack.c.b16 %v282, %v281
        %v287 = vpack.c.b16 %v284, %v283
        %vm288 = vcmask 261120
        %v290 = vsel %vm288, %v285, 0
        %v293 = vsel %vm288, %v286, 0
        %v296 = vsel %vm288, %v287, 0
        %298 = vmatprep.subr.bf16.mxu0 %v228
        %299 = vmatpush1.bf16.msra.mxu0 %v227
        %300 = vmatprep.subr.bf16.mxu0 %v230
        %301 = vmatpush1.bf16.msra.mxu0 %v229
        %302 = vmatprep.subr.bf16.mxu0 0
        %303 = vmatpush1.bf16.msra.mxu0 0
        %304 = vmatprep.subr.bf16.mxu0 0
        %305 = vmatpush1.bf16.msra.mxu0 0
        %306 = vmatprep.subr.bf16.mxu0 0
        %307 = vmatpush1.bf16.msra.mxu0 0
        %308 = vmatprep.subr.bf16.mxu0 0
        %309 = vmatpush1.bf16.msra.mxu0 0
        %310 = vmatprep.subr.bf16.mxu0 0
        %311 = vmatpush1.bf16.msra.mxu0 0
        %312 = vmatprep.subr.bf16.mxu0 0
        %313 = vmatpush1.bf16.msra.mxu0 0
        %314 = vmatprep.subr.bf16.mxu0 0
        %315 = vmatpush1.bf16.msra.mxu0 0
        %316 = vmatprep.subr.bf16.mxu0 0
        %317 = vmatpush1.bf16.msra.mxu0 0
        %318 = vmatprep.subr.bf16.mxu0 0
        %319 = vmatpush1.bf16.msra.mxu0 0
        %320 = vmatprep.subr.bf16.mxu0 0
        %321 = vmatpush1.bf16.msra.mxu0 0
        %322 = vmatprep.subr.bf16.mxu0 0
        %323 = vmatpush1.bf16.msra.mxu0 0
        %324 = vmatprep.subr.bf16.mxu0 0
        %325 = vmatpush1.bf16.msra.mxu0 0
        %326 = vmatprep.subr.bf16.mxu0 0
        %327 = vmatpush1.bf16.msra.mxu0 0
        %328 = vmatprep.subr.bf16.mxu0 0
        %329 = vmatpush1.bf16.msra.mxu0 0
        %330 = vmatprep.mubr.bf16.mxu0 0
        %331 = vmatmul.mubr.bf16.gmra.mrb[0].mxu0 %v290
        %v332 = vpop.f32.mrb[0].mxu0
        %v333 = vadd.f32 %v246, %v332
        %v334 = vpop.f32.mrb[0].mxu0
        %v335 = vadd.f32 %v246, %v334
        %v336 = vpop.f32.mrb[0].mxu0
        %v337 = vadd.f32 %v251, %v336
        %v338 = vpop.f32.mrb[0].mxu0
        %v339 = vadd.f32 %v251, %v338
        %340 = vmatprep.mubr.bf16.mxu0 0
        %341 = vmatmul.mubr.bf16.gmra.mrb[0].mxu0 %v293
        %v342 = vpop.f32.mrb[0].mxu0
        %v343 = vadd.f32 %v256, %v342
        %v344 = vpop.f32.mrb[0].mxu0
        %v345 = vadd.f32 %v256, %v344
        %v346 = vpop.f32.mrb[0].mxu0
        %v347 = vadd.f32 %v261, %v346
        %v348 = vpop.f32.mrb[0].mxu0
        %v349 = vadd.f32 %v261, %v348
        %350 = vmatprep.mubr.bf16.mxu0 0
        %351 = vmatmul.mubr.bf16.gmra.mrb[0].mxu0 %v296
        %v352 = vpop.f32.mrb[0].mxu0
        %v353 = vadd.f32 %v266, %v352
        %v354 = vpop.f32.mrb[0].mxu0
        %v355 = vadd.f32 %v266, %v354
        %v356 = vpop.f32.mrb[0].mxu0
        %v357 = vadd.f32 %v271, %v356
        %v358 = vpop.f32.mrb[0].mxu0
        %v359 = vadd.f32 %v271, %v358
        %360 = vdwg.mxu0
        %v361 = vpack.c.bf16 %v333, %v333
        %v362 = vpack.c.bf16 %v335, %v335
        %v363 = vpack.c.bf16 %v337, %v337
        %v364 = vpack.c.bf16 %v339, %v339
        %v365 = vpack.c.bf16 %v347, %v343
        %v366 = vpack.c.bf16 %v349, %v345
        %v367 = vpack.c.bf16 %v357, %v353
        %v368 = vpack.c.bf16 %v359, %v355
        %369 = vxpose.xlu0.c.b16.start [1/8] %v363, 128
        %370 = vxpose.xlu0.c.b16.cont [2/8] 0, 128
        %371 = vxpose.xlu0.c.b16.cont [3/8] 0, 128
        %372 = vxpose.xlu0.c.b16.cont [4/8] 0, 128
        %373 = vxpose.xlu0.c.b16.cont [5/8] 0, 128
        %374 = vxpose.xlu0.c.b16.cont [6/8] 0, 128
        %375 = vxpose.xlu0.c.b16.cont [7/8] 0, 128
        %376 = vxpose.xlu0.c.b16.end [8/8] 0, 128
        %v377 = vpop.trf.xlu0
        %v378 = vpop.trf.xlu0
        %v379 = vpop.trf.xlu0
        %v380 = vpop.trf.xlu0
        %v381 = vpop.trf.xlu0
        %v382 = vpop.trf.xlu0
        %v383 = vpop.trf.xlu0
        %v384 = vpop.trf.xlu0
        %385 = vxpose.xlu0.c.b16.start [1/8] %v364, 128
        %386 = vxpose.xlu0.c.b16.cont [2/8] 0, 128
        %387 = vxpose.xlu0.c.b16.cont [3/8] 0, 128
        %388 = vxpose.xlu0.c.b16.cont [4/8] 0, 128
        %389 = vxpose.xlu0.c.b16.cont [5/8] 0, 128
        %390 = vxpose.xlu0.c.b16.cont [6/8] 0, 128
        %391 = vxpose.xlu0.c.b16.cont [7/8] 0, 128
        %392 = vxpose.xlu0.c.b16.end [8/8] 0, 128
        %v393 = vpop.trf.xlu0
        %v394 = vpop.trf.xlu0
        %v395 = vpop.trf.xlu0
        %v396 = vpop.trf.xlu0
        %v397 = vpop.trf.xlu0
        %v398 = vpop.trf.xlu0
        %v399 = vpop.trf.xlu0
        %v400 = vpop.trf.xlu0
        %vm401 = vcmask 64512
        %v403 = vsel %vm401, %v377, 0
        %v406 = vsel %vm401, %v378, 0
        %v409 = vsel %vm401, %v379, 0
        %v412 = vsel %vm401, %v380, 0
        %v415 = vsel %vm401, %v381, 0
        %v418 = vsel %vm401, %v382, 0
        %v421 = vsel %vm401, %v383, 0
        %v424 = vsel %vm401, %v384, 0
        %v427 = vsel %vm401, %v393, 0
        %v430 = vsel %vm401, %v394, 0
        %v433 = vsel %vm401, %v395, 0
        %v436 = vsel %vm401, %v396, 0
        %v439 = vsel %vm401, %v397, 0
        %v442 = vsel %vm401, %v398, 0
        %v445 = vsel %vm401, %v399, 0
        %v448 = vsel %vm401, %v400, 0
        %vm450 = vcmask 1043456
        %v452 = vsel %vm450, %v361, 0
        %v455 = vsel %vm450, %v362, 0
        %457 = vmatprep.subr.bf16.mxu0 %v455
        %458 = vmatpush1.bf16.msra.mxu0 %v452
        %459 = vmatprep.subr.bf16.mxu0 0
        %460 = vmatpush1.bf16.msra.mxu0 0
        %461 = vmatprep.subr.bf16.mxu0 0
        %462 = vmatpush1.bf16.msra.mxu0 0
        %463 = vmatprep.subr.bf16.mxu0 0
        %464 = vmatpush1.bf16.msra.mxu0 0
        %465 = vmatprep.subr.bf16.mxu0 0
        %466 = vmatpush1.bf16.msra.mxu0 0
        %467 = vmatprep.subr.bf16.mxu0 0
        %468 = vmatpush1.bf16.msra.mxu0 0
        %469 = vmatprep.subr.bf16.mxu0 0
        %470 = vmatpush1.bf16.msra.mxu0 0
        %471 = vmatprep.subr.bf16.mxu0 0
        %472 = vmatpush1.bf16.msra.mxu0 0
        %473 = vmatprep.subr.bf16.mxu0 0
        %474 = vmatpush1.bf16.msra.mxu0 0
        %475 = vmatprep.subr.bf16.mxu0 0
        %476 = vmatpush1.bf16.msra.mxu0 0
        %477 = vmatprep.subr.bf16.mxu0 0
        %478 = vmatpush1.bf16.msra.mxu0 0
        %479 = vmatprep.subr.bf16.mxu0 0
        %480 = vmatpush1.bf16.msra.mxu0 0
        %481 = vmatprep.subr.bf16.mxu0 0
        %482 = vmatpush1.bf16.msra.mxu0 0
        %483 = vmatprep.subr.bf16.mxu0 0
        %484 = vmatpush1.bf16.msra.mxu0 0
        %485 = vmatprep.subr.bf16.mxu0 0
        %486 = vmatpush1.bf16.msra.mxu0 0
        %487 = vmatprep.subr.bf16.mxu0 0
        %488 = vmatpush1.bf16.msra.mxu0 0
        %489 = vmatprep.mubr.bf16.mxu0 0
        %490 = vmatmul.mubr.bf16.gmra.mrb[0].mxu0 %v403
        %v491 = vpop.f32.mrb[0].mxu0
        %v492 = vadd.f32 0.0, %v491
        %v493 = vpop.f32.mrb[0].mxu0
        %v494 = vadd.f32 0.0, %v493
        %v495 = vpop.f32.mrb[0].mxu0
        %v496 = vadd.f32 0.0, %v495
        %v497 = vpop.f32.mrb[0].mxu0
        %v498 = vadd.f32 0.0, %v497
        %499 = vmatprep.mubr.bf16.mxu0 0
        %500 = vmatmul.mubr.bf16.gmra.mrb[0].mxu0 %v406
        %v501 = vpop.f32.mrb[0].mxu0
        %v502 = vadd.f32 0.0, %v501
        %v503 = vpop.f32.mrb[0].mxu0
        %v504 = vadd.f32 0.0, %v503
        %v505 = vpop.f32.mrb[0].mxu0
        %v506 = vadd.f32 0.0, %v505
        %v507 = vpop.f32.mrb[0].mxu0
        %v508 = vadd.f32 0.0, %v507
        %509 = vmatprep.mubr.bf16.mxu0 0
        %510 = vmatmul.mubr.bf16.gmra.mrb[0].mxu0 %v409
        %v511 = vpop.f32.mrb[0].mxu0
        %v512 = vadd.f32 0.0, %v511
        %v513 = vpop.f32.mrb[0].mxu0
        %v514 = vadd.f32 0.0, %v513
        %v515 = vpop.f32.mrb[0].mxu0
        %v516 = vadd.f32 0.0, %v515
        %v517 = vpop.f32.mrb[0].mxu0
        %v518 = vadd.f32 0.0, %v517
        %519 = vmatprep.mubr.bf16.mxu0 0
        %520 = vmatmul.mubr.bf16.gmra.mrb[0].mxu0 %v412
        %v521 = vpop.f32.mrb[0].mxu0
        %v522 = vadd.f32 0.0, %v521
        %v523 = vpop.f32.mrb[0].mxu0
        %v524 = vadd.f32 0.0, %v523
        %v525 = vpop.f32.mrb[0].mxu0
        %v526 = vadd.f32 0.0, %v525
        %v527 = vpop.f32.mrb[0].mxu0
        %v528 = vadd.f32 0.0, %v527
        %529 = vmatprep.mubr.bf16.mxu0 0
        %530 = vmatmul.mubr.bf16.gmra.mrb[0].mxu0 %v415
        %v531 = vpop.f32.mrb[0].mxu0
        %v532 = vadd.f32 0.0, %v531
        %v533 = vpop.f32.mrb[0].mxu0
        %v534 = vadd.f32 0.0, %v533
        %v535 = vpop.f32.mrb[0].mxu0
        %v536 = vadd.f32 0.0, %v535
        %v537 = vpop.f32.mrb[0].mxu0
        %v538 = vadd.f32 0.0, %v537
        %539 = vmatprep.mubr.bf16.mxu0 0
        %540 = vmatmul.mubr.bf16.gmra.mrb[0].mxu0 %v418
        %v541 = vpop.f32.mrb[0].mxu0
        %v542 = vadd.f32 0.0, %v541
        %v543 = vpop.f32.mrb[0].mxu0
        %v544 = vadd.f32 0.0, %v543
        %v545 = vpop.f32.mrb[0].mxu0
        %v546 = vadd.f32 0.0, %v545
        %v547 = vpop.f32.mrb[0].mxu0
        %v548 = vadd.f32 0.0, %v547
        %549 = vmatprep.mubr.bf16.mxu0 0
        %550 = vmatmul.mubr.bf16.gmra.mrb[0].mxu0 %v421
        %v551 = vpop.f32.mrb[0].mxu0
        %v552 = vadd.f32 0.0, %v551
        %v553 = vpop.f32.mrb[0].mxu0
        %v554 = vadd.f32 0.0, %v553
        %v555 = vpop.f32.mrb[0].mxu0
        %v556 = vadd.f32 0.0, %v555
        %v557 = vpop.f32.mrb[0].mxu0
        %v558 = vadd.f32 0.0, %v557
        %559 = vmatprep.mubr.bf16.mxu0 0
        %560 = vmatmul.mubr.bf16.gmra.mrb[0].mxu0 %v424
        %v561 = vpop.f32.mrb[0].mxu0
        %v562 = vadd.f32 0.0, %v561
        %v563 = vpop.f32.mrb[0].mxu0
        %v564 = vadd.f32 0.0, %v563
        %v565 = vpop.f32.mrb[0].mxu0
        %v566 = vadd.f32 0.0, %v565
        %v567 = vpop.f32.mrb[0].mxu0
        %v568 = vadd.f32 0.0, %v567
        %569 = vmatprep.mubr.bf16.mxu0 0
        %570 = vmatmul.mubr.bf16.gmra.mrb[0].mxu0 %v427
        %v571 = vpop.f32.mrb[0].mxu0
        %v572 = vadd.f32 0.0, %v571
        %v573 = vpop.f32.mrb[0].mxu0
        %v574 = vadd.f32 0.0, %v573
        %v575 = vpop.f32.mrb[0].mxu0
        %v576 = vadd.f32 0.0, %v575
        %v577 = vpop.f32.mrb[0].mxu0
        %v578 = vadd.f32 0.0, %v577
        %579 = vmatprep.mubr.bf16.mxu0 0
        %580 = vmatmul.mubr.bf16.gmra.mrb[0].mxu0 %v430
        %v581 = vpop.f32.mrb[0].mxu0
        %v582 = vadd.f32 0.0, %v581
        %v583 = vpop.f32.mrb[0].mxu0
        %v584 = vadd.f32 0.0, %v583
        %v585 = vpop.f32.mrb[0].mxu0
        %v586 = vadd.f32 0.0, %v585
        %v587 = vpop.f32.mrb[0].mxu0
        %v588 = vadd.f32 0.0, %v587
        %589 = vmatprep.mubr.bf16.mxu0 0
        %590 = vmatmul.mubr.bf16.gmra.mrb[0].mxu0 %v433
        %v591 = vpop.f32.mrb[0].mxu0
        %v592 = vadd.f32 0.0, %v591
        %v593 = vpop.f32.mrb[0].mxu0
        %v594 = vadd.f32 0.0, %v593
        %v595 = vpop.f32.mrb[0].mxu0
        %v596 = vadd.f32 0.0, %v595
        %v597 = vpop.f32.mrb[0].mxu0
        %v598 = vadd.f32 0.0, %v597
        %599 = vmatprep.mubr.bf16.mxu0 0
        %600 = vmatmul.mubr.bf16.gmra.mrb[0].mxu0 %v436
        %v601 = vpop.f32.mrb[0].mxu0
        %v602 = vadd.f32 0.0, %v601
        %v603 = vpop.f32.mrb[0].mxu0
        %v604 = vadd.f32 0.0, %v603
        %v605 = vpop.f32.mrb[0].mxu0
        %v606 = vadd.f32 0.0, %v605
        %v607 = vpop.f32.mrb[0].mxu0
        %v608 = vadd.f32 0.0, %v607
        %609 = vmatprep.mubr.bf16.mxu0 0
        %610 = vmatmul.mubr.bf16.gmra.mrb[0].mxu0 %v439
        %v611 = vpop.f32.mrb[0].mxu0
        %v612 = vadd.f32 0.0, %v611
        %v613 = vpop.f32.mrb[0].mxu0
        %v614 = vadd.f32 0.0, %v613
        %v615 = vpop.f32.mrb[0].mxu0
        %v616 = vadd.f32 0.0, %v615
        %v617 = vpop.f32.mrb[0].mxu0
        %v618 = vadd.f32 0.0, %v617
        %619 = vmatprep.mubr.bf16.mxu0 0
        %620 = vmatmul.mubr.bf16.gmra.mrb[0].mxu0 %v442
        %v621 = vpop.f32.mrb[0].mxu0
        %v622 = vadd.f32 0.0, %v621
        %v623 = vpop.f32.mrb[0].mxu0
        %v624 = vadd.f32 0.0, %v623
        %v625 = vpop.f32.mrb[0].mxu0
        %v626 = vadd.f32 0.0, %v625
        %v627 = vpop.f32.mrb[0].mxu0
        %v628 = vadd.f32 0.0, %v627
        %629 = vmatprep.mubr.bf16.mxu0 0
        %630 = vmatmul.mubr.bf16.gmra.mrb[0].mxu0 %v445
        %v631 = vpop.f32.mrb[0].mxu0
        %v632 = vadd.f32 0.0, %v631
        %v633 = vpop.f32.mrb[0].mxu0
        %v634 = vadd.f32 0.0, %v633
        %v635 = vpop.f32.mrb[0].mxu0
        %v636 = vadd.f32 0.0, %v635
        %v637 = vpop.f32.mrb[0].mxu0
        %v638 = vadd.f32 0.0, %v637
        %639 = vmatprep.mubr.bf16.mxu0 0
        %640 = vmatmul.mubr.bf16.gmra.mrb[0].mxu0 %v448
        %v641 = vpop.f32.mrb[0].mxu0
        %v642 = vadd.f32 0.0, %v641
        %v643 = vpop.f32.mrb[0].mxu0
        %v644 = vadd.f32 0.0, %v643
        %v645 = vpop.f32.mrb[0].mxu0
        %v646 = vadd.f32 0.0, %v645
        %v647 = vpop.f32.mrb[0].mxu0
        %v648 = vadd.f32 0.0, %v647
        %649 = vdwg.mxu0
        %v650 = vmax.f32 %v492, %v502
        %v651 = vmax.f32 %v496, %v506
        %v652 = vmax.f32 %v650, %v512
        %v653 = vmax.f32 %v651, %v516
        %v654 = vmax.f32 %v652, %v522
        %v655 = vmax.f32 %v653, %v526
        %v656 = vmax.f32 %v654, %v532
        %v657 = vmax.f32 %v655, %v536
        %v658 = vmax.f32 %v656, %v542
        %v659 = vmax.f32 %v657, %v546
        %v660 = vmax.f32 %v658, %v552
        %v661 = vmax.f32 %v659, %v556
        %v662 = vmax.f32 %v660, %v562
        %v663 = vmax.f32 %v661, %v566
        %v664 = vmax.f32 %v662, %v572
        %v665 = vmax.f32 %v663, %v576
        %v666 = vmax.f32 %v664, %v582
        %v667 = vmax.f32 %v665, %v586
        %v668 = vmax.f32 %v666, %v592
        %v669 = vmax.f32 %v667, %v596
        %v670 = vmax.f32 %v668, %v602
        %v671 = vmax.f32 %v669, %v606
        %v672 = vmax.f32 %v670, %v612
        %v673 = vmax.f32 %v671, %v616
        %v674 = vmax.f32 %v672, %v622
        %v675 = vmax.f32 %v673, %v626
        %v676 = vmax.f32 %v674, %v632
        %v677 = vmax.f32 %v675, %v636
        %v678 = vmax.f32 %v676, %v642
        %v679 = vmax.f32 %v677, %v646
        %v680 = vmax.f32 %v678, %v679
        %v681 = vrot.slane %v680, 4
        %v682 = vmax.f32 %v680, %v681
        %v683 = vrot.slane %v682, 2
        %v684 = vmax.f32 %v682, %v683
        %v685 = vrot.slane %v684, 1
        %v686 = vmax.f32 %v684, %v685
        %v687 = vmax.f32 %v494, %v504
        %v688 = vmax.f32 %v498, %v508
        %v689 = vmax.f32 %v687, %v514
        %v690 = vmax.f32 %v688, %v518
        %v691 = vmax.f32 %v689, %v524
        %v692 = vmax.f32 %v690, %v528
        %v693 = vmax.f32 %v691, %v534
        %v694 = vmax.f32 %v692, %v538
        %v695 = vmax.f32 %v693, %v544
        %v696 = vmax.f32 %v694, %v548
        %v697 = vmax.f32 %v695, %v554
        %v698 = vmax.f32 %v696, %v558
        %v699 = vmax.f32 %v697, %v564
        %v700 = vmax.f32 %v698, %v568
        %v701 = vmax.f32 %v699, %v574
        %v702 = vmax.f32 %v700, %v578
        %v703 = vmax.f32 %v701, %v584
        %v704 = vmax.f32 %v702, %v588
        %v705 = vmax.f32 %v703, %v594
        %v706 = vmax.f32 %v704, %v598
        %v707 = vmax.f32 %v705, %v604
        %v708 = vmax.f32 %v706, %v608
        %v709 = vmax.f32 %v707, %v614
        %v710 = vmax.f32 %v708, %v618
        %v711 = vmax.f32 %v709, %v624
        %v712 = vmax.f32 %v710, %v628
        %v713 = vmax.f32 %v711, %v634
        %v714 = vmax.f32 %v712, %v638
        %v715 = vmax.f32 %v713, %v644
        %v716 = vmax.f32 %v714, %v648
        %v717 = vmax.f32 %v715, %v716
        %v718 = vrot.slane %v717, 4
        %v719 = vmax.f32 %v717, %v718
        %v720 = vrot.slane %v719, 2
        %v721 = vmax.f32 %v719, %v720
        %v722 = vrot.slane %v721, 1
        %v723 = vmax.f32 %v721, %v722
        %v724 = vsub.f32 %v492, %v686
        %v725 = vsub.f32 %v494, %v723
        %v726 = vsub.f32 %v496, %v686
        %v727 = vsub.f32 %v498, %v723
        %v728 = vsub.f32 %v502, %v686
        %v729 = vsub.f32 %v504, %v723
        %v730 = vsub.f32 %v506, %v686
        %v731 = vsub.f32 %v508, %v723
        %v732 = vsub.f32 %v512, %v686
        %v733 = vsub.f32 %v514, %v723
        %v734 = vsub.f32 %v516, %v686
        %v735 = vsub.f32 %v518, %v723
        %v736 = vsub.f32 %v522, %v686
        %v737 = vsub.f32 %v524, %v723
        %v738 = vsub.f32 %v526, %v686
        %v739 = vsub.f32 %v528, %v723
        %v740 = vsub.f32 %v532, %v686
        %v741 = vsub.f32 %v534, %v723
        %v742 = vsub.f32 %v536, %v686
        %v743 = vsub.f32 %v538, %v723
        %v744 = vsub.f32 %v542, %v686
        %v745 = vsub.f32 %v544, %v723
        %v746 = vsub.f32 %v546, %v686
        %v747 = vsub.f32 %v548, %v723
        %v748 = vsub.f32 %v552, %v686
        %v749 = vsub.f32 %v554, %v723
        %v750 = vsub.f32 %v556, %v686
        %v751 = vsub.f32 %v558, %v723
        %v752 = vsub.f32 %v562, %v686
        %v753 = vsub.f32 %v564, %v723
        %v754 = vsub.f32 %v566, %v686
        %v755 = vsub.f32 %v568, %v723
        %v756 = vsub.f32 %v572, %v686
        %v757 = vsub.f32 %v574, %v723
        %v758 = vsub.f32 %v576, %v686
        %v759 = vsub.f32 %v578, %v723
        %v760 = vsub.f32 %v582, %v686
        %v761 = vsub.f32 %v584, %v723
        %v762 = vsub.f32 %v586, %v686
        %v763 = vsub.f32 %v588, %v723
        %v764 = vsub.f32 %v592, %v686
        %v765 = vsub.f32 %v594, %v723
        %v766 = vsub.f32 %v596, %v686
        %v767 = vsub.f32 %v598, %v723
        %v768 = vsub.f32 %v602, %v686
        %v769 = vsub.f32 %v604, %v723
        %v770 = vsub.f32 %v606, %v686
        %v771 = vsub.f32 %v608, %v723
        %v772 = vsub.f32 %v612, %v686
        %v773 = vsub.f32 %v614, %v723
        %v774 = vsub.f32 %v616, %v686
        %v775 = vsub.f32 %v618, %v723
        %v776 = vsub.f32 %v622, %v686
        %v777 = vsub.f32 %v624, %v723
        %v778 = vsub.f32 %v626, %v686
        %v779 = vsub.f32 %v628, %v723
        %v780 = vsub.f32 %v632, %v686
        %v781 = vsub.f32 %v634, %v723
        %v782 = vsub.f32 %v636, %v686
        %v783 = vsub.f32 %v638, %v723
        %v784 = vsub.f32 %v642, %v686
        %v785 = vsub.f32 %v644, %v723
        %v786 = vsub.f32 %v646, %v686
        %v787 = vsub.f32 %v648, %v723
        %v788 = vmul.f32 %v724, 1.442695
        %v789 = vpow.pop %v788
        %v790 = vmul.f32 %v725, 1.442695
        %v791 = vpow.pop %v790
        %v792 = vmul.f32 %v726, 1.442695
        %v793 = vpow.pop %v792
        %v794 = vmul.f32 %v727, 1.442695
        %v795 = vpow.pop %v794
        %v796 = vmul.f32 %v728, 1.442695
        %v797 = vpow.pop %v796
        %v798 = vmul.f32 %v729, 1.442695
        %v799 = vpow.pop %v798
        %v800 = vmul.f32 %v730, 1.442695
        %v801 = vpow.pop %v800
        %v802 = vmul.f32 %v731, 1.442695
        %v803 = vpow.pop %v802
        %v804 = vmul.f32 %v732, 1.442695
        %v805 = vpow.pop %v804
        %v806 = vmul.f32 %v733, 1.442695
        %v807 = vpow.pop %v806
        %v808 = vmul.f32 %v734, 1.442695
        %v809 = vpow.pop %v808
        %v810 = vmul.f32 %v735, 1.442695
        %v811 = vpow.pop %v810
        %v812 = vmul.f32 %v736, 1.442695
        %v813 = vpow.pop %v812
        %v814 = vmul.f32 %v737, 1.442695
        %v815 = vpow.pop %v814
        %v816 = vmul.f32 %v738, 1.442695
        %v817 = vpow.pop %v816
        %v818 = vmul.f32 %v739, 1.442695
        %v819 = vpow.pop %v818
        %v820 = vmul.f32 %v740, 1.442695
        %v821 = vpow.pop %v820
        %v822 = vmul.f32 %v741, 1.442695
        %v823 = vpow.pop %v822
        %v824 = vmul.f32 %v742, 1.442695
        %v825 = vpow.pop %v824
        %v826 = vmul.f32 %v743, 1.442695
        %v827 = vpow.pop %v826
        %v828 = vmul.f32 %v744, 1.442695
        %v829 = vpow.pop %v828
        %v830 = vmul.f32 %v745, 1.442695
        %v831 = vpow.pop %v830
        %v832 = vmul.f32 %v746, 1.442695
        %v833 = vpow.pop %v832
        %v834 = vmul.f32 %v747, 1.442695
        %v835 = vpow.pop %v834
        %v836 = vmul.f32 %v748, 1.442695
        %v837 = vpow.pop %v836
        %v838 = vmul.f32 %v749, 1.442695
        %v839 = vpow.pop %v838
        %v840 = vmul.f32 %v750, 1.442695
        %v841 = vpow.pop %v840
        %v842 = vmul.f32 %v751, 1.442695
        %v843 = vpow.pop %v842
        %v844 = vmul.f32 %v752, 1.442695
        %v845 = vpow.pop %v844
        %v846 = vmul.f32 %v753, 1.442695
        %v847 = vpow.pop %v846
        %v848 = vmul.f32 %v754, 1.442695
        %v849 = vpow.pop %v848
        %v850 = vmul.f32 %v755, 1.442695
        %v851 = vpow.pop %v850
        %v852 = vmul.f32 %v756, 1.442695
        %v853 = vpow.pop %v852
        %v854 = vmul.f32 %v757, 1.442695
        %v855 = vpow.pop %v854
        %v856 = vmul.f32 %v758, 1.442695
        %v857 = vpow.pop %v856
        %v858 = vmul.f32 %v759, 1.442695
        %v859 = vpow.pop %v858
        %v860 = vmul.f32 %v760, 1.442695
        %v861 = vpow.pop %v860
        %v862 = vmul.f32 %v761, 1.442695
        %v863 = vpow.pop %v862
        %v864 = vmul.f32 %v762, 1.442695
        %v865 = vpow.pop %v864
        %v866 = vmul.f32 %v763, 1.442695
        %v867 = vpow.pop %v866
        %v868 = vmul.f32 %v764, 1.442695
        %v869 = vpow.pop %v868
        %v870 = vmul.f32 %v765, 1.442695
        %v871 = vpow.pop %v870
        %v872 = vmul.f32 %v766, 1.442695
        %v873 = vpow.pop %v872
        %v874 = vmul.f32 %v767, 1.442695
        %v875 = vpow.pop %v874
        %v876 = vmul.f32 %v768, 1.442695
        %v877 = vpow.pop %v876
        %v878 = vmul.f32 %v769, 1.442695
        %v879 = vpow.pop %v878
        %v880 = vmul.f32 %v770, 1.442695
        %v881 = vpow.pop %v880
        %v882 = vmul.f32 %v771, 1.442695
        %v883 = vpow.pop %v882
        %v884 = vmul.f32 %v772, 1.442695
        %v885 = vpow.pop %v884
        %v886 = vmul.f32 %v773, 1.442695
        %v887 = vpow.pop %v886
        %v888 = vmul.f32 %v774, 1.442695
        %v889 = vpow.pop %v888
        %v890 = vmul.f32 %v775, 1.442695
        %v891 = vpow.pop %v890
        %v892 = vmul.f32 %v776, 1.442695
        %v893 = vpow.pop %v892
        %v894 = vmul.f32 %v777, 1.442695
        %v895 = vpow.pop %v894
        %v896 = vmul.f32 %v778, 1.442695
        %v897 = vpow.pop %v896
        %v898 = vmul.f32 %v779, 1.442695
        %v899 = vpow.pop %v898
        %v900 = vmul.f32 %v780, 1.442695
        %v901 = vpow.pop %v900
        %v902 = vmul.f32 %v781, 1.442695
        %v903 = vpow.pop %v902
        %v904 = vmul.f32 %v782, 1.442695
        %v905 = vpow.pop %v904
        %v906 = vmul.f32 %v783, 1.442695
        %v907 = vpow.pop %v906
        %v908 = vmul.f32 %v784, 1.442695
        %v909 = vpow.pop %v908
        %v910 = vmul.f32 %v785, 1.442695
        %v911 = vpow.pop %v910
        %v912 = vmul.f32 %v786, 1.442695
        %v913 = vpow.pop %v912
        %v914 = vmul.f32 %v787, 1.442695
        %v915 = vpow.pop %v914
        %v916 = vadd.f32 %v789, %v793
        %v917 = vadd.f32 %v916, %v797
        %v918 = vadd.f32 %v917, %v801
        %v919 = vadd.f32 %v918, %v805
        %v920 = vadd.f32 %v919, %v809
        %v921 = vadd.f32 %v920, %v813
        %v922 = vadd.f32 %v921, %v817
        %v923 = vadd.f32 %v922, %v821
        %v924 = vadd.f32 %v923, %v825
        %v925 = vadd.f32 %v924, %v829
        %v926 = vadd.f32 %v925, %v833
        %v927 = vadd.f32 %v926, %v837
        %v928 = vadd.f32 %v927, %v841
        %v929 = vadd.f32 %v928, %v845
        %v930 = vadd.f32 %v929, %v849
        %v931 = vadd.f32 %v930, %v853
        %v932 = vadd.f32 %v931, %v857
        %v933 = vadd.f32 %v932, %v861
        %v934 = vadd.f32 %v933, %v865
        %v935 = vadd.f32 %v934, %v869
        %v936 = vadd.f32 %v935, %v873
        %v937 = vadd.f32 %v936, %v877
        %v938 = vadd.f32 %v937, %v881
        %v939 = vadd.f32 %v938, %v885
        %v940 = vadd.f32 %v939, %v889
        %v941 = vadd.f32 %v940, %v893
        %v942 = vadd.f32 %v941, %v897
        %v943 = vadd.f32 %v942, %v901
        %v944 = vadd.f32 %v943, %v905
        %v945 = vadd.f32 %v944, %v909
        %v946 = vadd.f32 %v945, %v913
        %v947 = vrot.slane %v946, 4
        %v948 = vadd.f32 %v946, %v947
        %v949 = vrot.slane %v948, 2
        %v950 = vadd.f32 %v948, %v949
        %v951 = vrot.slane %v950, 1
        %v952 = vadd.f32 %v950, %v951
        %v953 = vadd.f32 %v791, %v795
        %v954 = vadd.f32 %v953, %v799
        %v955 = vadd.f32 %v954, %v803
        %v956 = vadd.f32 %v955, %v807
        %v957 = vadd.f32 %v956, %v811
        %v958 = vadd.f32 %v957, %v815
        %v959 = vadd.f32 %v958, %v819
        %v960 = vadd.f32 %v959, %v823
        %v961 = vadd.f32 %v960, %v827
        %v962 = vadd.f32 %v961, %v831
        %v963 = vadd.f32 %v962, %v835
        %v964 = vadd.f32 %v963, %v839
        %v965 = vadd.f32 %v964, %v843
        %v966 = vadd.f32 %v965, %v847
        %v967 = vadd.f32 %v966, %v851
        %v968 = vadd.f32 %v967, %v855
        %v969 = vadd.f32 %v968, %v859
        %v970 = vadd.f32 %v969, %v863
        %v971 = vadd.f32 %v970, %v867
        %v972 = vadd.f32 %v971, %v871
        %v973 = vadd.f32 %v972, %v875
        %v974 = vadd.f32 %v973, %v879
        %v975 = vadd.f32 %v974, %v883
        %v976 = vadd.f32 %v975, %v887
        %v977 = vadd.f32 %v976, %v891
        %v978 = vadd.f32 %v977, %v895
        %v979 = vadd.f32 %v978, %v899
        %v980 = vadd.f32 %v979, %v903
        %v981 = vadd.f32 %v980, %v907
        %v982 = vadd.f32 %v981, %v911
        %v983 = vadd.f32 %v982, %v915
        %v984 = vrot.slane %v983, 4
        %v985 = vadd.f32 %v983, %v984
        %v986 = vrot.slane %v985, 2
        %v987 = vadd.f32 %v985, %v986
        %v988 = vrot.slane %v987, 1
        %v989 = vadd.f32 %v987, %v988
        %v990 = vpack.c.bf16 %v793, %v789
        %v991 = vpack.c.bf16 %v795, %v791
        %v992 = vpack.c.bf16 %v801, %v797
        %v993 = vpack.c.bf16 %v803, %v799
        %v994 = vpack.c.bf16 %v809, %v805
        %v995 = vpack.c.bf16 %v811, %v807
        %v996 = vpack.c.bf16 %v817, %v813
        %v997 = vpack.c.bf16 %v819, %v815
        %v998 = vpack.c.bf16 %v825, %v821
        %v999 = vpack.c.bf16 %v827, %v823
        %v1000 = vpack.c.bf16 %v833, %v829
        %v1001 = vpack.c.bf16 %v835, %v831
        %v1002 = vpack.c.bf16 %v841, %v837
        %v1003 = vpack.c.bf16 %v843, %v839
        %v1004 = vpack.c.bf16 %v849, %v845
        %v1005 = vpack.c.bf16 %v851, %v847
        %v1006 = vpack.c.bf16 %v857, %v853
        %v1007 = vpack.c.bf16 %v859, %v855
        %v1008 = vpack.c.bf16 %v865, %v861
        %v1009 = vpack.c.bf16 %v867, %v863
        %v1010 = vpack.c.bf16 %v873, %v869
        %v1011 = vpack.c.bf16 %v875, %v871
        %v1012 = vpack.c.bf16 %v881, %v877
        %v1013 = vpack.c.bf16 %v883, %v879
        %v1014 = vpack.c.bf16 %v889, %v885
        %v1015 = vpack.c.bf16 %v891, %v887
        %v1016 = vpack.c.bf16 %v897, %v893
        %v1017 = vpack.c.bf16 %v899, %v895
        %v1018 = vpack.c.bf16 %v905, %v901
        %v1019 = vpack.c.bf16 %v907, %v903
        %v1020 = vpack.c.bf16 %v913, %v909
        %v1021 = vpack.c.bf16 %v915, %v911
        %1022 = vmatprep.subr.bf16.mxu0 %v991
        %1023 = vmatpush1.bf16.msra.mxu0 %v990
        %1024 = vmatprep.subr.bf16.mxu0 %v993
        %1025 = vmatpush1.bf16.msra.mxu0 %v992
        %1026 = vmatprep.subr.bf16.mxu0 %v995
        %1027 = vmatpush1.bf16.msra.mxu0 %v994
        %1028 = vmatprep.subr.bf16.mxu0 %v997
        %1029 = vmatpush1.bf16.msra.mxu0 %v996
        %1030 = vmatprep.subr.bf16.mxu0 %v999
        %1031 = vmatpush1.bf16.msra.mxu0 %v998
        %1032 = vmatprep.subr.bf16.mxu0 %v1001
        %1033 = vmatpush1.bf16.msra.mxu0 %v1000
        %1034 = vmatprep.subr.bf16.mxu0 %v1003
        %1035 = vmatpush1.bf16.msra.mxu0 %v1002
        %1036 = vmatprep.subr.bf16.mxu0 %v1005
        %1037 = vmatpush1.bf16.msra.mxu0 %v1004
        %1038 = vmatprep.subr.bf16.mxu0 %v1007
        %1039 = vmatpush1.bf16.msra.mxu0 %v1006
        %1040 = vmatprep.subr.bf16.mxu0 %v1009
        %1041 = vmatpush1.bf16.msra.mxu0 %v1008
        %1042 = vmatprep.subr.bf16.mxu0 %v1011
        %1043 = vmatpush1.bf16.msra.mxu0 %v1010
        %1044 = vmatprep.subr.bf16.mxu0 %v1013
        %1045 = vmatpush1.bf16.msra.mxu0 %v1012
        %1046 = vmatprep.subr.bf16.mxu0 %v1015
        %1047 = vmatpush1.bf16.msra.mxu0 %v1014
        %1048 = vmatprep.subr.bf16.mxu0 %v1017
        %1049 = vmatpush1.bf16.msra.mxu0 %v1016
        %1050 = vmatprep.subr.bf16.mxu0 %v1019
        %1051 = vmatpush1.bf16.msra.mxu0 %v1018
        %1052 = vmatprep.subr.bf16.mxu0 %v1021
        %1053 = vmatpush1.bf16.msra.mxu0 %v1020
        %1054 = vmatprep.mubr.bf16.mxu0 %v366
        %1055 = vmatmul.mubr.bf16.gmra.mrb[0].mxu0 %v365
        %v1056 = vpop.f32.mrb[0].mxu0
        %v1057 = vadd.f32 0.0, %v1056
        %v1058 = vpop.f32.mrb[0].mxu0
        %v1059 = vadd.f32 0.0, %v1058
        %v1060 = vpop.f32.mrb[0].mxu0
        %v1061 = vadd.f32 0.0, %v1060
        %v1062 = vpop.f32.mrb[0].mxu0
        %v1063 = vadd.f32 0.0, %v1062
        %1064 = vmatprep.mubr.bf16.mxu0 %v368
        %1065 = vmatmul.mubr.bf16.gmra.mrb[0].mxu0 %v367
        %v1066 = vpop.f32.mrb[0].mxu0
        %v1067 = vadd.f32 0.0, %v1066
        %v1068 = vpop.f32.mrb[0].mxu0
        %v1069 = vadd.f32 0.0, %v1068
        %v1070 = vpop.f32.mrb[0].mxu0
        %v1071 = vadd.f32 0.0, %v1070
        %v1072 = vpop.f32.mrb[0].mxu0
        %v1073 = vadd.f32 0.0, %v1072
        %1074 = vdwg.mxu0
        %v1075 = vrcp.pop %v952
        %v1076 = vrcp.pop %v989
        %v1077 = vstv %s218
        %v1078 = vmul.f32 %v1077, %v1075
        %v1079 = vmul.f32 %v1077, %v1076
        %v1080 = vmul.f32 %v1057, %v1078
        %v1081 = vmul.f32 %v1059, %v1079
        %v1082 = vmul.f32 %v1061, %v1078
        %v1083 = vmul.f32 %v1063, %v1079
        %v1084 = vmul.f32 %v1067, %v1078
        %v1085 = vmul.f32 %v1069, %v1079
        %v1086 = vmul.f32 %v1071, %v1078
        %v1087 = vmul.f32 %v1073, %v1079
        %v1088 = vadd.f32 %v1080, %v219
        %v1089 = vadd.f32 %v1081, %v220
        %v1090 = vadd.f32 %v1082, %v221
        %v1091 = vadd.f32 %v1083, %v222
        %v1092 = vadd.f32 %v1084, %v223
        %v1093 = vadd.f32 %v1085, %v224
        %v1094 = vadd.f32 %v1086, %v225
        %v1095 = vadd.f32 %v1087, %v226
        %1096 = vst [vmem:[%s216] sm:$0xff] %v1088
        %1097 = vst [vmem:[%s216 + $0x8] sm:$0xff] %v1089
        %1098 = vst [vmem:[%s216 + $0x10] sm:$0xff] %v1090
        %1099 = vst [vmem:[%s216 + $0x18] sm:$0xff] %v1091
        %1100 = vst [vmem:[%s216 + $0x20] sm:$0xff] %v1092
        %1101 = vst [vmem:[%s216 + $0x28] sm:$0xff] %v1093
        %1102 = vst [vmem:[%s216 + $0x30] sm:$0xff] %v1094
        %1103 = vst [vmem:[%s216 + $0x38] sm:$0xff] %v1095
        %s1104 = sand.u32 %s119, 1
        %s1105 = scalar_lea.sflag [#allocation5], %s1104
        %s1106 = sand.u32 %s119, 1
        %s1107 = smul.addr %s1106, 64
        %s1108 = scalar_lea.vmem [#allocation6], %s1107
        // Predicated region
        $region41: #{tpu_custom_call.1} parent=35 // pred_check
          %p1109 = pneg %p129
        $region42: #{tpu_custom_call.1} parent=35 // pred_check_branch
          %1111 = sbr.rel (%p1109) target = $region44
        $region43: #{tpu_custom_call.1} parent=35 // pred_region
          %s1113 = ssub.s32 1024, 1024
          %1114 = vsyncadd %s1105, %s1113
          %s1115 = smul.addr %s22, 8
          %s1116 = smul.addr %s1115, 128
          %s1117 = scalar_lea.hbm %s4, %s1116
          %s1118 = sshll.u32 %s1108, 4
          %s1119 = int_to_ptr.vmem [resolvable:$true] %s1118
          %1124 = dma.vmem_to_hbm [thread:$0]  %s1119, 1024, %s1117, %s1105, 256, 256, 16
        $region44: #{tpu_custom_call.1} parent=35 // pred_fallthru
          _
      $region36: #{tpu_custom_call.1} parent=5 // pred_fallthru
        _
      %p1125 = scmp.le.s32.totalorder 2, %s17
      // Predicated region
      $region45: #{tpu_custom_call.1} parent=5 // pred_check
        %p1126 = pneg %p1125
      $region46: #{tpu_custom_call.1} parent=5 // pred_check_branch
        %1128 = sbr.rel (%p1126) target = $region48
      $region47: #{tpu_custom_call.1} parent=5 // pred_region
        %s1129 = ssub.s32 %s17, 2
        // Predicated region
        $region49: #{tpu_custom_call.1} parent=47 // pred_check
          %p1130 = pneg %p135
        $region50: #{tpu_custom_call.1} parent=47 // pred_check_branch
          %1132 = sbr.rel (%p1130) target = $region52
        $region51: #{tpu_custom_call.1} parent=47 // pred_region
          %s1133 = sand.u32 %s120, 1
          %s1134 = scalar_lea.sflag [#allocation5], %s1133
          %s1135 = sand.u32 %s120, 1
          %s1136 = smul.addr %s1135, 64
          %s1137 = scalar_lea.vmem [#allocation6], %s1136
          %1138 = dma.done %s1134, 1024
        $region52: #{tpu_custom_call.1} parent=47 // pred_fallthru
          _
      $region48: #{tpu_custom_call.1} parent=5 // pred_fallthru
        _
    $region6: #{tpu_custom_call.1} parent=1 // loop_footer
      %s21 = sadd.s32 1, %s17
    $region7: #{tpu_custom_call.1} parent=1 // loop_footer_branch
      %16 = sbr.rel target = $region3
    $region8: #{tpu_custom_call.1} parent=1 // loop_exit
      _
    %1139 = vsyncpa [#allocation4], 1
    %s1140 = scalar_lea.sflag [#allocation4], 1
    %1141 = vsyncpa %s1140, 1
    %1142 = vsyncpa [#allocation5], 1
    %s1143 = scalar_lea.sflag [#allocation5], 1
    %1144 = vsyncpa %s1143, 1

</llo_original>
